<compile_context>
chip_gen: v6e
topology: v6e:2x2x1
jax: 0.10.0
libtpu: 0.0.40
codegen_flags: <defaults>
</compile_context>

<pallas_src>
import functools

import numpy as np
import jax
import jax.numpy as jnp
from jax.experimental import pallas as pl
from jax.experimental.pallas import tpu as pltpu


def _round_up(x: int, m: int) -> int:
    return (x + m - 1) // m * m


def _pad2(x, rows: int, cols: int, row_fill: float = 0.0):
    """Pad a 2-D array: extra columns with zeros (safe for norms / dot),
    extra rows with `row_fill` (nonzero avoids inf/nan in padded rows)."""
    r, c = x.shape
    if c < cols:
        x = jnp.pad(x, ((0, 0), (0, cols - c)))
    if r < rows:
        x = jnp.pad(x, ((0, rows - r), (0, 0)), constant_values=row_fill)
    return x


def _coco_loss_kernel(feat_ref, nct_ref, out_ref, snfeat_ref, *, alpha):
    """One (TB, TC) logits tile.

    feat_ref   : (TB, Dp)  raw features (block index constant across j)
    nct_ref    : (Dp, TC)  pre-normalized, pre-transposed centers
    out_ref    : (TB, TC)  logits tile (lane-dense stores)
    snfeat_ref : (TB, Dp)  VMEM cache of alpha * feat / ||feat||
    """
    j = pl.program_id(1)  # class-tile index (innermost grid axis)

    # Normalize + scale the feat tile once per batch tile; reuse for every
    # class tile (j > 0).  Norms in f32; rsqrt runs on the EUP; alpha folded
    # into the per-row scalar.
    @pl.when(j == 0)
    def _():
        f = feat_ref[...].astype(jnp.float32)                        # (TB, Dp)
        inv = alpha * jax.lax.rsqrt(
            jnp.sum(f * f, axis=-1, keepdims=True))                  # (TB, 1)
        snfeat_ref[...] = (f * inv).astype(snfeat_ref.dtype)

    # Pure (TB, Dp) x (Dp, TC) MXU matmul, f32 accumulation.  The RHS is
    # already normalized and in (K, N) layout -> no per-step transpose.
    out_ref[...] = jax.lax.dot_general(
        snfeat_ref[...], nct_ref[...],
        dimension_numbers=(((1,), (0,)), ((), ())),
        preferred_element_type=jnp.float32,
    ).astype(out_ref.dtype)


def coco_loss_forward(feat, centers, alpha=6.25, *,
                      block_b=1024, block_c=512,
                      mxu_dtype=None, out_dtype=None,
                      vmem_budget_bytes=48 * 1024 * 1024):
    """feat: (B, feat_dim), centers: (num_classes, feat_dim) -> (B, num_classes)."""
    B, D = feat.shape
    C, Dc = centers.shape
    assert D == Dc, "feat_dim mismatch"

    # MXU operand dtype: bf16 inputs stay bf16 (f32 accumulation); f32 inputs
    # stay f32 for bit-faithful results.  Pass mxu_dtype=jnp.bfloat16 to trade
    # a little precision for speed on v5e's slow f32 MXU path.
    if mxu_dtype is None:
        mxu_dtype = (jnp.bfloat16
                     if (feat.dtype == jnp.bfloat16 and centers.dtype == jnp.bfloat16)
                     else jnp.float32)
    if out_dtype is None:
        out_dtype = feat.dtype

    # One-time mem-bound pre-pass (O(C*D)): normalize centers in f32 and lay
    # them out as (D, C) so the kernel consumes a native (K, N) MXU operand.
    c32 = centers.astype(jnp.float32)
    inv_c = jax.lax.rsqrt(jnp.sum(c32 * c32, axis=-1, keepdims=True))
    ncenters_t = (c32 * inv_c).astype(mxu_dtype).T                   # (D, C)

    # Tile sizes: TB multiple of 8 (sublanes), TC multiple of 128 (lane-dense
    # output stores), D padded to a multiple of 128 lanes and kept whole.
    Dp = _round_up(D, 128)
    TB = min(_round_up(max(block_b, 8), 8), _round_up(B, 8))
    TC = min(_round_up(max(block_c, 128), 128), _round_up(C, 128))

    feat_bytes = np.dtype(feat.dtype).itemsize
    op_bytes = np.dtype(mxu_dtype).itemsize
    out_bytes = np.dtype(out_dtype).itemsize

    def vmem_need(tb, tc):
        return (2 * tb * Dp * feat_bytes      # feat double buffer
                + 2 * Dp * tc * op_bytes      # centers double buffer
                + 2 * tb * tc * out_bytes     # out double buffer
                + tb * Dp * op_bytes)         # snfeat scratch

    # Shrink tiles (classes first, then batch) to stay within the VMEM budget
    # (sized for v7x's 64 MiB physical VMEM).
    while vmem_need(TB, TC) > vmem_budget_bytes:
        if TC > 256:
            TC = max(128, _round_up(TC // 2, 128))
        elif TB > 8:
            TB = max(8, _round_up(TB // 2, 8))
        else:
            break

    Bp = _round_up(B, TB)
    Cp = _round_up(C, TC)

    # Only pay the pad HBM pass when shapes actually need it.
    feat_in = feat if (Bp == B and Dp == D) else _pad2(feat, Bp, Dp, row_fill=1.0)
    nct_in = ncenters_t if (Dp == D and Cp == C) else _pad2(ncenters_t, Dp, Cp)

    grid = (Bp // TB, Cp // TC)
    kernel = functools.partial(_coco_loss_kernel, alpha=float(alpha))

    vmem_limit = int(min(max(vmem_need(TB, TC) * 5 // 4, 32 * 1024 * 1024),
                         60 * 1024 * 1024))

    out = pl.pallas_call(
        kernel,
        out_shape=jax.ShapeDtypeStruct((Bp, Cp), out_dtype),
        grid_spec=pltpu.PrefetchScalarGridSpec(
            num_scalar_prefetch=0,
            grid=grid,
            in_specs=[
                pl.BlockSpec((TB, Dp), lambda i, j: (i, 0)),   # feat tile
                pl.BlockSpec((Dp, TC), lambda i, j: (0, j)),   # normalized centers.T
            ],
            out_specs=pl.BlockSpec((TB, TC), lambda i, j: (i, j)),
            scratch_shapes=[pltpu.VMEM((TB, Dp), mxu_dtype)],  # cached snfeat
        ),
        compiler_params=pltpu.CompilerParams(
            # batch-tile axis shards across TensorCores; class-tile axis is
            # sequential because the snfeat cache is filled at j == 0.
            dimension_semantics=("parallel", "arbitrary"),
            vmem_limit_bytes=vmem_limit,
        ),
    )(feat_in, nct_in)

    if (Bp, Cp) != (B, C):
        out = out[:B, :C]
    return out


if __name__ == "__main__":
    key = jax.random.PRNGKey(0)
    k1, k2, k3, k4 = jax.random.split(key, 4)
    alpha = 6.25

    def reference(feat, centers, alpha):
        nfeat = feat / jnp.linalg.norm(feat, axis=-1, keepdims=True)
        ncenters = centers / jnp.linalg.norm(centers, axis=-1, keepdims=True)
        return jnp.matmul(alpha * nfeat, ncenters.T,
                          precision=jax.lax.Precision.HIGHEST)

    # Case 1: small shapes consistent with the module
    # (batch=8, feat_dim=32, num_classes=16).
    B, D, C = 8, 32, 16
    feat = jax.random.normal(k1, (B, D), dtype=jnp.float32)
    centers = jax.random.normal(k2, (C, D), dtype=jnp.float32)

    logits = coco_loss_forward(feat, centers, alpha=alpha)
    jax.block_until_ready(logits)
    ref = reference(feat, centers, alpha)
    assert logits.shape == (B, C)
    assert jnp.allclose(logits, ref, atol=2e-2, rtol=2e-2)

    # Case 2: non-aligned shapes with small tiles to exercise the 2-D grid,
    # padding/slicing, and the cached-snfeat path (j > 0 reuses the scratch).
    B2, D2, C2 = 40, 200, 300
    feat2 = jax.random.normal(k3, (B2, D2), dtype=jnp.float32)
    centers2 = jax.random.normal(k4, (C2, D2), dtype=jnp.float32)

    logits2 = coco_loss_forward(feat2, centers2, alpha=alpha,
                                block_b=16, block_c=128)
    jax.block_until_ready(logits2)
    ref2 = reference(feat2, centers2, alpha)
    assert logits2.shape == (B2, C2)
    assert jnp.allclose(logits2, ref2, atol=2e-2, rtol=2e-2)

    print("KERNEL_OK")
</pallas_src>

<mosaic_0001>
module attributes {stable_mosaic.version = 11 : i64} {
  func.func @_coco_loss_kernel(%arg0: i32, %arg1: i32, %arg2: memref<8x128xf32, #tpu.memory_space<vmem>>, %arg3: memref<128x128xf32, #tpu.memory_space<vmem>>, %arg4: memref<8x128xf32, #tpu.memory_space<vmem>>, %arg5: memref<8x128xf32, #tpu.memory_space<vmem>>) attributes {dimension_semantics = [#tpu.dimension_semantics<parallel>, #tpu.dimension_semantics<arbitrary>], iteration_bounds = array<i64: 1, 1>, scalar_prefetch = 0 : i64, scratch_operands = 1 : i64, tpu.core_type = #tpu.core_type<tc>, window_params = [{transform_indices = @transform_0, window_bounds = array<i64: 8, 128>}, {transform_indices = @transform_1, window_bounds = array<i64: 128, 128>}, {transform_indices = @transform_2, window_bounds = array<i64: 8, 128>}]} {
    %c0_i32 = arith.constant 0 : i32
    %0 = arith.cmpi eq, %arg1, %c0_i32 : i32
    %1 = arith.extui %0 : i1 to i32
    %c0_i32_0 = arith.constant 0 : i32
    %2 = arith.cmpi ne, %1, %c0_i32_0 : i32
    scf.if %2 {
      %c0_6 = arith.constant 0 : index
      %c0_7 = arith.constant 0 : index
      %7 = vector.load %arg2[%c0_6, %c0_7] : memref<8x128xf32, #tpu.memory_space<vmem>>, vector<8x128xf32>
      %8 = arith.mulf %7, %7 : vector<8x128xf32>
      %cst_8 = arith.constant dense<0.000000e+00> : vector<8xf32>
      %9 = vector.multi_reduction <add>, %8, %cst_8 [1] : vector<8x128xf32> to vector<8xf32>
      %10 = vector.shape_cast %9 : vector<8xf32> to vector<8x1xf32>
      %11 = math.rsqrt %10 : vector<8x1xf32>
      %cst_9 = arith.constant 6.250000e+00 : f32
      %12 = vector.broadcast %cst_9 : f32 to vector<8x1xf32>
      %13 = arith.mulf %12, %11 : vector<8x1xf32>
      %14 = vector.broadcast %13 : vector<8x1xf32> to vector<8x128xf32>
      %15 = arith.mulf %7, %14 : vector<8x128xf32>
      %c0_10 = arith.constant 0 : index
      %c0_11 = arith.constant 0 : index
      %16 = vector.load %arg5[%c0_10, %c0_11] : memref<8x128xf32, #tpu.memory_space<vmem>>, vector<8x128xf32>
      tpu.vector_store %arg5[%c0_10, %c0_11], %15 {strides = array<i32>} : memref<8x128xf32, #tpu.memory_space<vmem>>, vector<8x128xf32>,
    } else {
    }
    %c0 = arith.constant 0 : index
    %c0_1 = arith.constant 0 : index
    %3 = vector.load %arg5[%c0, %c0_1] : memref<8x128xf32, #tpu.memory_space<vmem>>, vector<8x128xf32>
    %c0_2 = arith.constant 0 : index
    %c0_3 = arith.constant 0 : index
    %4 = vector.load %arg3[%c0_2, %c0_3] : memref<128x128xf32, #tpu.memory_space<vmem>>, vector<128x128xf32>
    %cst = arith.constant dense<0.000000e+00> : vector<8x128xf32>
    %5 = tpu.matmul %3, %4, %cst {dimension_numbers = #tpu.dot_dimension_numbers<[1], [0], [0], [1], [0, 0, 1, 1], [], []>} : vector<8x128xf32>, vector<128x128xf32>, vector<8x128xf32> -> vector<8x128xf32>
    %c0_4 = arith.constant 0 : index
    %c0_5 = arith.constant 0 : index
    %6 = vector.load %arg4[%c0_4, %c0_5] : memref<8x128xf32, #tpu.memory_space<vmem>>, vector<8x128xf32>
    tpu.vector_store %arg4[%c0_4, %c0_5], %5 {strides = array<i32>} : memref<8x128xf32, #tpu.memory_space<vmem>>, vector<8x128xf32>,
    return
  }
  func.func @transform_0(%arg0: i32, %arg1: i32) -> (i32, i32) {
    %c0_i32 = arith.constant 0 : i32
    %c0_i32_0 = arith.constant 0 : i32
    return %arg0, %c0_i32 : i32, i32
  }
  func.func @transform_1(%arg0: i32, %arg1: i32) -> (i32, i32) {
    %c0_i32 = arith.constant 0 : i32
    %c0_i32_0 = arith.constant 0 : i32
    return %c0_i32, %arg1 : i32, i32
  }
  func.func @transform_2(%arg0: i32, %arg1: i32) -> (i32, i32) {
    %c0_i32 = arith.constant 0 : i32
    return %arg0, %arg1 : i32, i32
  }
}

</mosaic_0001>

<llo_original>
// kernel: tpu_custom_call.1
$region0: #{tpu_custom_call.1}
  #allocation0 [shape = 'u32[]', space=smem, size = 0x4, offset = 0x4, fixed_abs, tag = 'smem constant byte address 0x4 - core index']
  #allocation1 [shape = 'u32[144,128]{1,0:T(1,128)}', space=vmem, size = 0x12000, scoped, tag = 'internal scratch']
  #allocation2 [shape = 'f32[8,128]{1,0:T(8,128)}', space=vmem, size = 0x1000, scoped, tag = 'scratch operand']
  %s0 = inlined_call_operand.hbm [shape: f32[8,128], index: 0, kind: input, shape index: {}]
  %s1 = inlined_call_operand.hbm [shape: f32[128,128], index: 1, kind: input, shape index: {}]
  %s2 = inlined_call_operand.hbm [shape: f32[8,128], index: 2, kind: output, shape index: {}]
  %s3 = sld [smem:[#allocation0]]
  $region30: #{tpu_custom_call.1} parent=0
    _
  %s5 = ssub.s32 1, %s3
  %s6 = scalar_select 0, %s5, %s3
  $region1: #{tpu_custom_call.1} parent=0
    #allocation3 [shape = 'u8[4096]{0}', space=vmem, size = 0x1000, scoped, tag = 'input window, operand 0, single buffered']
    #allocation4 [shape = 's32[1]{0}', space=sflag, size = 0x4, scoped, tag = 'scoped memory for tpu_custom_call.1']
    #allocation5 [shape = 's32[1]{0}', space=sflag, size = 0x4, scoped, tag = 'scoped memory for tpu_custom_call.1']
    #allocation6 [shape = 'u8[65536]{0}', space=vmem, size = 0x10000, scoped, tag = 'input window, operand 1, single buffered']
    #allocation7 [shape = 's32[1]{0}', space=sflag, size = 0x4, scoped, tag = 'scoped memory for tpu_custom_call.1']
    #allocation8 [shape = 'u8[4096]{0}', space=vmem, size = 0x1000, scoped, tag = 'output window, operand 0, single buffered']
    %7 = vsyncpa [#allocation4], 0
    %8 = vsyncpa [#allocation7], 0
    %9 = vsyncpa [#allocation5], 0
    // Predicated region
    $region2: #{tpu_custom_call.1} parent=1 // pred_check
      _
    $region3: #{tpu_custom_call.1} parent=1 // pred_check_branch
      %11 = sbr.rel (0) target = $region5
    $region4: #{tpu_custom_call.1} parent=1 // pred_region
      %s13 = ssub.s32 128, 128
      %14 = vsyncadd [#allocation4], %s13
      %s16 = sshll.u32 [#allocation3], 4
      %s17 = int_to_ptr.vmem [resolvable:$true] %s16
      %19 = dma.hbm_to_vmem [thread:$0]  %s0, 128, %s17, [#allocation4]
    $region5: #{tpu_custom_call.1} parent=1 // pred_fallthru
      _
    // Predicated region
    $region6: #{tpu_custom_call.1} parent=1 // pred_check
      _
    $region7: #{tpu_custom_call.1} parent=1 // pred_check_branch
      %21 = sbr.rel (0) target = $region9
    $region8: #{tpu_custom_call.1} parent=1 // pred_region
      %s23 = ssub.s32 2048, 2048
      %24 = vsyncadd [#allocation7], %s23
      %s25 = sshll.u32 [#allocation6], 4
      %s26 = int_to_ptr.vmem [resolvable:$true] %s25
      %31 = dma.hbm_to_vmem [thread:$0]  %s1, 2048, %s26, [#allocation7], 128, 128, 8
    $region9: #{tpu_custom_call.1} parent=1 // pred_fallthru
      _
    // Predicated region
    $region10: #{tpu_custom_call.1} parent=1 // pred_check
      _
    $region11: #{tpu_custom_call.1} parent=1 // pred_check_branch
      %33 = sbr.rel (0) target = $region13
    $region12: #{tpu_custom_call.1} parent=1 // pred_region
      %34 = dma.done [#allocation4], 128
    $region13: #{tpu_custom_call.1} parent=1 // pred_fallthru
      _
    // Predicated region
    $region14: #{tpu_custom_call.1} parent=1 // pred_check
      _
    $region15: #{tpu_custom_call.1} parent=1 // pred_check_branch
      %36 = sbr.rel (0) target = $region17
    $region16: #{tpu_custom_call.1} parent=1 // pred_region
      %37 = dma.done [#allocation7], 2048
    $region17: #{tpu_custom_call.1} parent=1 // pred_fallthru
      _
    %p38 = scmp.eq.s32.totalorder 0, 0
    // Predicated region
    $region18: #{tpu_custom_call.1} parent=1 // pred_check
      %p39 = pneg %p38
    $region19: #{tpu_custom_call.1} parent=1 // pred_check_branch
      %41 = sbr.rel (%p39) target = $region21
    $region20: #{tpu_custom_call.1} parent=1 // pred_region
      %v42 = vld [vmem:[#allocation3] sm:$0xff]
      %v43 = vmul.f32 %v42, %v42
      %44 = vadd.xlane.f32.xlu0 %v43
      %v45 = vpop.xlane.xlu0 %44
      %v46 = vrsqrt.pop %v45
      %v47 = vmul.f32 %v46, 6.25
      %v48 = vmul.f32 %v42, %v47
      %49 = vst [vmem:[#allocation2] sm:$0xff] %v48
    $region21: #{tpu_custom_call.1} parent=1 // pred_fallthru
      _
    %v50 = vld [vmem:[#allocation2] sm:$0xff]
    %v51 = vld [vmem:[#allocation6] sm:$0xff]
    %v52 = vld [vmem:[#allocation6 + $0x8] sm:$0xff]
    %v53 = vld [vmem:[#allocation6 + $0x10] sm:$0xff]
    %v54 = vld [vmem:[#allocation6 + $0x18] sm:$0xff]
    %v55 = vld [vmem:[#allocation6 + $0x20] sm:$0xff]
    %v56 = vld [vmem:[#allocation6 + $0x28] sm:$0xff]
    %v57 = vld [vmem:[#allocation6 + $0x30] sm:$0xff]
    %v58 = vld [vmem:[#allocation6 + $0x38] sm:$0xff]
    %v59 = vld [vmem:[#allocation6 + $0x40] sm:$0xff]
    %v60 = vld [vmem:[#allocation6 + $0x48] sm:$0xff]
    %v61 = vld [vmem:[#allocation6 + $0x50] sm:$0xff]
    %v62 = vld [vmem:[#allocation6 + $0x58] sm:$0xff]
    %v63 = vld [vmem:[#allocation6 + $0x60] sm:$0xff]
    %v64 = vld [vmem:[#allocation6 + $0x68] sm:$0xff]
    %v65 = vld [vmem:[#allocation6 + $0x70] sm:$0xff]
    %v66 = vld [vmem:[#allocation6 + $0x78] sm:$0xff]
    %67 = vmatprep.subr.mxu0 0.0
    %68 = vmatpush1.msra.mxu0 %v66
    %69 = vmatprep.subr.mxu0 0.0
    %70 = vmatpush1.msra.mxu0 %v65
    %71 = vmatprep.subr.mxu0 0.0
    %72 = vmatpush1.msra.mxu0 %v64
    %73 = vmatprep.subr.mxu0 0.0
    %74 = vmatpush1.msra.mxu0 %v63
    %75 = vmatprep.subr.mxu0 0.0
    %76 = vmatpush1.msra.mxu0 %v62
    %77 = vmatprep.subr.mxu0 0.0
    %78 = vmatpush1.msra.mxu0 %v61
    %79 = vmatprep.subr.mxu0 0.0
    %80 = vmatpush1.msra.mxu0 %v60
    %81 = vmatprep.subr.mxu0 0.0
    %82 = vmatpush1.msra.mxu0 %v59
    %83 = vmatprep.subr.mxu0 0.0
    %84 = vmatpush1.msra.mxu0 %v58
    %85 = vmatprep.subr.mxu0 0.0
    %86 = vmatpush1.msra.mxu0 %v57
    %87 = vmatprep.subr.mxu0 0.0
    %88 = vmatpush1.msra.mxu0 %v56
    %89 = vmatprep.subr.mxu0 0.0
    %90 = vmatpush1.msra.mxu0 %v55
    %91 = vmatprep.subr.mxu0 0.0
    %92 = vmatpush1.msra.mxu0 %v54
    %93 = vmatprep.subr.mxu0 0.0
    %94 = vmatpush1.msra.mxu0 %v53
    %95 = vmatprep.subr.mxu0 0.0
    %96 = vmatpush1.msra.mxu0 %v52
    %97 = vmatprep.subr.mxu0 0.0
    %98 = vmatpush1.msra.mxu0 %v51
    %99 = vmatprep.subr.mxu0 0.0
    %100 = vmatpush2.msra.mxu0 0.0
    %101 = vmatprep.subr.mxu0 0.0
    %102 = vmatpush2.msra.mxu0 0.0
    %103 = vmatprep.subr.mxu0 0.0
    %104 = vmatpush2.msra.mxu0 0.0
    %105 = vmatprep.subr.mxu0 0.0
    %106 = vmatpush2.msra.mxu0 0.0
    %107 = vmatprep.subr.mxu0 0.0
    %108 = vmatpush2.msra.mxu0 0.0
    %109 = vmatprep.subr.mxu0 0.0
    %110 = vmatpush2.msra.mxu0 0.0
    %111 = vmatprep.subr.mxu0 0.0
    %112 = vmatpush2.msra.mxu0 0.0
    %113 = vmatprep.subr.mxu0 0.0
    %114 = vmatpush2.msra.mxu0 0.0
    %115 = vmatprep.subr.mxu0 0.0
    %116 = vmatpush2.msra.mxu0 0.0
    %117 = vmatprep.subr.mxu0 0.0
    %118 = vmatpush2.msra.mxu0 0.0
    %119 = vmatprep.subr.mxu0 0.0
    %120 = vmatpush2.msra.mxu0 0.0
    %121 = vmatprep.subr.mxu0 0.0
    %122 = vmatpush2.msra.mxu0 0.0
    %123 = vmatprep.subr.mxu0 0.0
    %124 = vmatpush2.msra.mxu0 0.0
    %125 = vmatprep.subr.mxu0 0.0
    %126 = vmatpush2.msra.mxu0 0.0
    %127 = vmatprep.subr.mxu0 0.0
    %128 = vmatpush2.msra.mxu0 0.0
    %129 = vmatprep.subr.mxu0 0.0
    %130 = vmatpush2.msra.mxu0 0.0
    %131 = vmatprep.mubr.f32.mxu0 0.0
    %132 = vmatmul.mubr.f32.gmra.mxu0 %v50
    %v133 = vpop.f32.mrf.mxu0
    %v134 = vadd.f32 0.0, %v133
    %v135 = vpop.f32.mrf.mxu0
    %136 = vdwg.mxu0
    %137 = vst [vmem:[#allocation8] sm:$0xff] %v134
    // Predicated region
    $region22: #{tpu_custom_call.1} parent=1 // pred_check
      _
    $region23: #{tpu_custom_call.1} parent=1 // pred_check_branch
      %139 = sbr.rel (0) target = $region25
    $region24: #{tpu_custom_call.1} parent=1 // pred_region
      %s141 = ssub.s32 128, 128
      %142 = vsyncadd [#allocation5], %s141
      %s144 = sshll.u32 [#allocation8], 4
      %s145 = int_to_ptr.vmem [resolvable:$true] %s144
      %147 = dma.vmem_to_hbm [thread:$0]  %s145, 128, %s2, [#allocation5]
    $region25: #{tpu_custom_call.1} parent=1 // pred_fallthru
      _
    // Predicated region
    $region26: #{tpu_custom_call.1} parent=1 // pred_check
      _
    $region27: #{tpu_custom_call.1} parent=1 // pred_check_branch
      %149 = sbr.rel (0) target = $region29
    $region28: #{tpu_custom_call.1} parent=1 // pred_region
      %150 = dma.done [#allocation5], 128
    $region29: #{tpu_custom_call.1} parent=1 // pred_fallthru
      _
    %151 = vsyncpa [#allocation4], 1
    %152 = vsyncpa [#allocation7], 1
    %153 = vsyncpa [#allocation5], 1

</llo_original>
